<compile_context>
chip_gen: v6e
topology: v6e:2x2x1
jax: 0.10.0
libtpu: 0.0.40
codegen_flags: <defaults>
</compile_context>

<pallas_src>
import numpy as np
import jax
import jax.numpy as jnp
from jax.experimental import pallas as pl
from jax.experimental.pallas import tpu as pltpu

LRELU_SLOPE = 0.2
BN_EPS = 1e-5


def _leaky_relu(y):
    return jnp.where(y >= 0, y, LRELU_SLOPE * y)


# ----------------------------------------------------------------- probing --
def _probe_roll_sign():
    """Determine pltpu.roll's rotation direction once at build time.

    Returns +1 if roll follows the jnp.roll convention
    (roll(x, s)[j] == x[(j - s) % L]) and -1 for the opposite convention.
    The main kernel's static tap shifts are derived from this value, so the
    fused kernel is correct under either convention / JAX version."""
    def k(x_ref, o_ref):
        o_ref[...] = pltpu.roll(x_ref[...], 1, axis=1)

    vmem = pl.BlockSpec(memory_space=pltpu.MemorySpace.VMEM)
    x = jnp.broadcast_to(jnp.arange(128, dtype=jnp.float32), (8, 128))
    out = pl.pallas_call(k,
                         out_shape=jax.ShapeDtypeStruct((8, 128), jnp.float32),
                         in_specs=[vmem], out_specs=vmem)(x)
    v = float(out[0, 0])
    if v == 127.0:
        return 1
    if v == 1.0:
        return -1
    raise RuntimeError(f"unexpected pltpu.roll semantics (probe got {v})")


# --------------------------------------------------------------- constants --
def _conv_gather_consts(n, h, w, k, s, p, roll_sign):
    """Shared stride-subsample matrix + per-tap lane shifts + padding masks.

    For tap (kh, kw) the gathered (C, R_out) row block is
        mask_t * ( roll(act, shift_t, lanes) @ D )
    where D picks the anchor pixel (s*oy, s*ox) of every output position and
    the lane roll moves tap (kh, kw)'s source pixel onto that anchor.  The
    0/1 mask zeroes output positions whose source pixel falls in the zero
    padding (there the roll wraps and would bring in a wrong pixel)."""
    ho = (h + 2 * p - k) // s + 1
    wo = (w + 2 * p - k) // s + 1
    r_in, r_out = n * h * w, n * ho * wo

    d = np.zeros((r_in, r_out), np.float32)
    for b in range(n):
        for oy in range(ho):
            for ox in range(wo):
                d[b * h * w + (s * oy) * w + (s * ox),
                  b * ho * wo + oy * wo + ox] = 1.0

    shifts = []
    masks = np.zeros((k * k, r_out), np.float32)
    for kh in range(k):
        for kw in range(k):
            t = kh * k + kw
            delta = (kh - p) * w + (kw - p)           # flat offset from anchor
            shifts.append((-roll_sign * delta) % r_in)
            for b in range(n):
                for oy in range(ho):
                    iy = s * oy + kh - p
                    for ox in range(wo):
                        ix = s * ox + kw - p
                        if 0 <= iy < h and 0 <= ix < w:
                            masks[t, b * ho * wo + oy * wo + ox] = 1.0
    return d, masks, shifts, ho, wo


def _im2col_T(x, k, s, p):
    """Entry-side conversion only: NCHW -> transposed im2col patch matrix
    (C*k*k, N*Ho*Wo); row order c*k*k + kh*k + kw matches torch weight.reshape."""
    n, c, h, w = x.shape
    xp = jnp.pad(x, ((0, 0), (0, 0), (p, p), (p, p)))
    ho = (h + 2 * p - k) // s + 1
    wo = (w + 2 * p - k) // s + 1
    taps = []
    for kh in range(k):
        for kw in range(k):
            taps.append(xp[:, :, kh:kh + s * ho:s, kw:kw + s * wo:s])  # (N,C,Ho,Wo)
    pt = jnp.stack(taps, axis=2)            # (N, C, k*k, Ho, Wo)
    pt = pt.transpose(1, 2, 0, 3, 4)        # (C, k*k, N, Ho, Wo)
    return pt.reshape(c * k * k, n * ho * wo)


# -------------------------------------------------------------- parameters --
def init_params(key, in_channels=4, in_shape=16, start_filters=8):
    """Deterministic synthetic parameters mirroring Discriminator.__init__."""
    params = []
    key, k1 = jax.random.split(key)
    params.append(dict(
        kind="in", stride=2, pad=1,
        w=0.05 * jax.random.normal(k1, (start_filters, in_channels, 4, 4), jnp.float32)))
    sf, shape = start_filters, in_shape
    while shape != 8:
        key, kw_, kg, kb = jax.random.split(key, 4)
        params.append(dict(
            kind="bn", stride=2, pad=1,
            w=0.05 * jax.random.normal(kw_, (sf * 2, sf, 4, 4), jnp.float32),
            gamma=1.0 + 0.1 * jax.random.normal(kg, (sf * 2,), jnp.float32),
            beta=0.1 * jax.random.normal(kb, (sf * 2,), jnp.float32)))
        sf *= 2
        shape //= 2
    key, kw_ = jax.random.split(key)
    params.append(dict(
        kind="head", stride=1, pad=0,
        w=0.05 * jax.random.normal(kw_, (1, sf, 4, 4), jnp.float32)))
    return params


# ------------------------------------------------------------ fused kernel --
def make_forward(params, batch, in_channels, in_shape):
    """Build forward(x): the whole Discriminator runs in ONE pallas_call."""
    n = batch
    roll_sign = _probe_roll_sign()

    plan = []        # static per-layer metadata driving kernel tracing
    fixed_ops = []   # weight / constant operands, in kernel argument order
    flops = 0
    transcendentals = 0

    # ---- in_block: Conv(k4,s2,p1,bias=False) + LeakyReLU as one bf16 matmul
    #      on the wrapper-built transposed im2col patches.
    l0 = params[0]
    c0_out, c0_in, k0, _ = l0["w"].shape
    s0, p0 = l0["stride"], l0["pad"]
    assert c0_in == in_channels
    sp = (in_shape + 2 * p0 - k0) // s0 + 1            # spatial after in_block
    plan.append(dict(kind="in"))
    fixed_ops.append(l0["w"].reshape(c0_out, c0_in * k0 * k0).astype(jnp.bfloat16))
    flops += 2 * c0_out * c0_in * k0 * k0 * n * sp * sp
    in_patch_bytes = (c0_in * k0 * k0) * (n * sp * sp) * 2     # bf16 input
    c_cur = c0_out

    # ---- BN blocks: in-kernel im2col (roll + shared subsample + tiny masks)
    #      then ONE K=C_in*k*k matmul, batch-statistics BatchNorm, LeakyReLU.
    for layer in params[1:-1]:
        co, ci, k, _ = layer["w"].shape
        assert ci == c_cur
        d, masks, shifts, ho, wo = _conv_gather_consts(
            n, sp, sp, k, layer["stride"], layer["pad"], roll_sign)
        plan.append(dict(
            kind="bn", kk=k * k, shifts=shifts,
            needs_mask=[bool(masks[t].min() < 1.0) for t in range(k * k)]))
        fixed_ops += [
            jnp.asarray(d, jnp.bfloat16),                               # shared subsample
            layer["w"].transpose(0, 2, 3, 1)                            # (co, k*k*ci):
                      .reshape(co, k * k * ci).astype(jnp.bfloat16),    #   rows (kh,kw,c)
            jnp.asarray(masks, jnp.float32),                            # per-tap padding masks
            layer["gamma"].reshape(co, 1),                              # per-sublane scale
            layer["beta"].reshape(co, 1),                               # per-sublane shift
        ]
        flops += 2 * co * ci * k * k * n * ho * wo
        transcendentals += co                                           # rsqrt per channel
        sp, c_cur = ho, co

    # ---- out_block: Conv(k4,s1,p0,bias=False) over the full remaining spatial
    #      map + Sigmoid.  VPU multiply + sublane reduce + lane-dense group-sum.
    lh = params[-1]
    ch_out, ch_in, kh_, _ = lh["w"].shape
    assert ch_out == 1 and ch_in == c_cur and lh["pad"] == 0 and sp == kh_
    out_lanes = 128                                      # lane-dense output slab
    gsum = np.zeros((n * kh_ * kh_, out_lanes), np.float32)
    gsum[:, :n] = np.kron(np.eye(n, dtype=np.float32),
                          np.ones((kh_ * kh_, 1), np.float32))
    plan.append(dict(kind="head"))
    fixed_ops += [
        jnp.tile(lh["w"].reshape(ch_in, kh_ * kh_), (1, n)),   # (C_in, N*k*k)
        jnp.asarray(gsum),                                     # (N*k*k, 128)
    ]
    flops += 2 * ch_in * kh_ * kh_ * n
    transcendentals += out_lanes                               # sigmoid exp

    def kernel(*refs):
        o_ref = refs[-1]
        idx = 0
        act = None                     # channel-major activation (C, N*H*W), f32
        for layer in plan:
            if layer["kind"] == "in":
                p_ref, w_ref = refs[idx], refs[idx + 1]
                idx += 2
                act = _leaky_relu(jnp.dot(w_ref[...], p_ref[...],
                                          preferred_element_type=jnp.float32))
            elif layer["kind"] == "bn":
                d_ref, cw_ref, m_ref, gam_ref, bet_ref = refs[idx:idx + 5]
                idx += 5
                d = d_ref[...]                      # shared subsample, loaded once
                pieces = []
                for t in range(layer["kk"]):        # static unroll over taps
                    shift = layer["shifts"][t]
                    rolled = act if shift == 0 else pltpu.roll(act, shift, axis=1)
                    g = jnp.dot(rolled.astype(jnp.bfloat16), d,
                                preferred_element_type=jnp.float32)
                    if layer["needs_mask"][t]:      # only the border taps
                        g = g * m_ref[pl.ds(t, 1), :]
                    pieces.append(g)
                # im2col patch matrix, rows ordered (kh, kw, c_in) to match the
                # (C_out, k*k*C_in) weight -> ONE K=C_in*k*k MXU matmul.
                patches = jnp.concatenate(pieces, axis=0).astype(jnp.bfloat16)
                y = jnp.dot(cw_ref[...], patches,
                            preferred_element_type=jnp.float32)
                # training-mode BatchNorm: stats over N*H*W (lane axis),
                # two-pass variance, eps = 1e-5; all f32 on the VPU/EUP.
                mean = jnp.mean(y, axis=1, keepdims=True)
                cent = y - mean
                var = jnp.mean(cent * cent, axis=1, keepdims=True)
                yhat = cent * jax.lax.rsqrt(var + BN_EPS)
                act = _leaky_relu(yhat * gam_ref[...] + bet_ref[...])
            else:  # head
                wrep_ref, gsum_ref = refs[idx], refs[idx + 1]
                idx += 2
                prod = act * wrep_ref[...]                        # (C, N*k*k) VPU
                grouped = jnp.dot(prod, gsum_ref[...],
                                  preferred_element_type=jnp.float32)  # (C, 128)
                logit = jnp.sum(grouped, axis=0, keepdims=True)   # (1, 128)
                sig = 1.0 / (1.0 + jnp.exp(-logit))               # exact sigmoid
                o_ref[...] = jnp.broadcast_to(sig, o_ref.shape)   # lane-dense store

    operand_bytes = sum(int(np.prod(a.shape)) * np.dtype(a.dtype).itemsize
                        for a in fixed_ops)
    out_bytes = 8 * out_lanes * 4
    bytes_accessed = in_patch_bytes + operand_bytes + out_bytes
    # Grid-less call: all operands + activations are VMEM-resident; budget with
    # generous headroom but stay under v7x's 64 MiB physical VMEM.
    vmem_limit = int(min(60 * 2**20, max(16 * 2**20, 8 * bytes_accessed)))

    vmem = pl.BlockSpec(memory_space=pltpu.MemorySpace.VMEM)
    fused = pl.pallas_call(
        kernel,
        out_shape=jax.ShapeDtypeStruct((8, out_lanes), jnp.float32),
        in_specs=[vmem] * (1 + len(fixed_ops)),
        out_specs=vmem,
        compiler_params=pltpu.CompilerParams(vmem_limit_bytes=vmem_limit),
        cost_estimate=pl.CostEstimate(flops=int(flops),
                                      transcendentals=int(transcendentals),
                                      bytes_accessed=int(bytes_accessed)),
    )

    def forward(x):
        pt = _im2col_T(x, k0, s0, p0).astype(jnp.bfloat16)   # entry-side only
        y = fused(pt, *fixed_ops)                            # whole net, one kernel
        return y[0, :n].reshape(n, 1, 1, 1)                  # exit-side to NCHW

    return forward


# --------------------------------------------------------- pure-JAX reference
def _reference_forward(x, params):
    def conv(v, w, s, p):
        return jax.lax.conv_general_dilated(
            v, w, window_strides=(s, s), padding=[(p, p), (p, p)],
            dimension_numbers=("NCHW", "OIHW", "NCHW"))

    l0 = params[0]
    y = conv(x, l0["w"], l0["stride"], l0["pad"])
    y = jnp.where(y >= 0, y, LRELU_SLOPE * y)
    for layer in params[1:-1]:
        y = conv(y, layer["w"], layer["stride"], layer["pad"])
        mean = jnp.mean(y, axis=(0, 2, 3), keepdims=True)
        var = jnp.mean((y - mean) ** 2, axis=(0, 2, 3), keepdims=True)
        y = (y - mean) * jax.lax.rsqrt(var + BN_EPS)
        y = y * layer["gamma"].reshape(1, -1, 1, 1) + layer["beta"].reshape(1, -1, 1, 1)
        y = jnp.where(y >= 0, y, LRELU_SLOPE * y)
    lh = params[-1]
    y = conv(y, lh["w"], lh["stride"], lh["pad"])
    return jax.nn.sigmoid(y)


# ------------------------------------------------------------------- main ---
if __name__ == "__main__":
    # Small config consistent with the module: in_channels=4, in_shape=16,
    # start_filters=8  ->  in_block (4->8, 16->8 spatial)
    #                      + one BN block (8->16, 8->4 spatial)
    #                      + out_block (16->1, 4->1 spatial, sigmoid)
    batch, in_channels, in_shape = 2, 4, 16
    key = jax.random.PRNGKey(0)
    key, kx = jax.random.split(key)
    x = jax.random.normal(kx, (batch, in_channels, in_shape, in_shape), jnp.float32)
    params = init_params(key, in_channels=in_channels, in_shape=in_shape,
                         start_filters=8)

    forward = jax.jit(make_forward(params, batch, in_channels, in_shape))
    y = forward(x)
    jax.block_until_ready(y)

    assert y.shape == (batch, 1, 1, 1), y.shape
    assert bool(jnp.all(jnp.isfinite(y)))
    assert bool(jnp.all((y >= 0.0) & (y <= 1.0)))

    # Numerical check against an f32 XLA reference (loose tol covers the bf16
    # MXU operands).
    ref = _reference_forward(x, params)
    max_err = float(jnp.max(jnp.abs(y - ref)))
    assert max_err < 5e-2, max_err

    print("KERNEL_OK")
</pallas_src>

<mosaic_0001>
module attributes {stable_mosaic.version = 11 : i64} {
  func.func @k(%arg0: memref<8x128xf32, #tpu.memory_space<vmem>>, %arg1: memref<8x128xf32, #tpu.memory_space<vmem>>) attributes {dimension_semantics = [], scalar_prefetch = 0 : i64, scratch_operands = 0 : i64, tpu.core_type = #tpu.core_type<tc>} {
    %c0 = arith.constant 0 : index
    %c0_0 = arith.constant 0 : index
    %0 = vector.load %arg0[%c0, %c0_0] : memref<8x128xf32, #tpu.memory_space<vmem>>, vector<8x128xf32>
    %c1_i32 = arith.constant 1 : i32
    %1 = tpu.dynamic_rotate %0 by %c1_i32 dim 1 : vector<8x128xf32>, i32 -> vector<8x128xf32>
    %c0_1 = arith.constant 0 : index
    %c0_2 = arith.constant 0 : index
    %2 = vector.load %arg1[%c0_1, %c0_2] : memref<8x128xf32, #tpu.memory_space<vmem>>, vector<8x128xf32>
    tpu.vector_store %arg1[%c0_1, %c0_2], %1 {strides = array<i32>} : memref<8x128xf32, #tpu.memory_space<vmem>>, vector<8x128xf32>,
    return
  }
}

</mosaic_0001>

<llo_original>
// kernel: tpu_custom_call.1
$region0: #{tpu_custom_call.1}
  #allocation0 [shape = 'u32[]', space=smem, size = 0x4, offset = 0x4, fixed_abs, tag = 'smem constant byte address 0x4 - core index']
  #allocation1 [shape = 'u32[144,128]{1,0:T(1,128)}', space=vmem, size = 0x12000, scoped, tag = 'internal scratch']
  %s0 = inlined_call_operand.hbm [shape: f32[8,128], index: 0, kind: input, shape index: {}]
  %s1 = inlined_call_operand.hbm [shape: f32[8,128], index: 1, kind: output, shape index: {}]
  %s2 = sld [smem:[#allocation0]]
  $region18: #{tpu_custom_call.1} parent=0
    _
  %s4 = ssub.s32 1, %s2
  %s5 = scalar_select 0, %s4, %s2
  $region1: #{tpu_custom_call.1} parent=0
    #allocation2 [shape = 'u8[4096]{0}', space=vmem, size = 0x1000, scoped, tag = 'input window, operand 0, single buffered']
    #allocation3 [shape = 's32[1]{0}', space=sflag, size = 0x4, scoped, tag = 'scoped memory for tpu_custom_call.1']
    #allocation4 [shape = 's32[1]{0}', space=sflag, size = 0x4, scoped, tag = 'scoped memory for tpu_custom_call.1']
    #allocation5 [shape = 'u8[4096]{0}', space=vmem, size = 0x1000, scoped, tag = 'output window, operand 0, single buffered']
    %6 = vsyncpa [#allocation3], 0
    %7 = vsyncpa [#allocation4], 0
    // Predicated region
    $region2: #{tpu_custom_call.1} parent=1 // pred_check
      _
    $region3: #{tpu_custom_call.1} parent=1 // pred_check_branch
      %9 = sbr.rel (0) target = $region5
    $region4: #{tpu_custom_call.1} parent=1 // pred_region
      %s11 = ssub.s32 128, 128
      %12 = vsyncadd [#allocation3], %s11
      %s14 = sshll.u32 [#allocation2], 4
      %s15 = int_to_ptr.vmem [resolvable:$true] %s14
      %17 = dma.hbm_to_vmem [thread:$0]  %s0, 128, %s15, [#allocation3]
    $region5: #{tpu_custom_call.1} parent=1 // pred_fallthru
      _
    // Predicated region
    $region6: #{tpu_custom_call.1} parent=1 // pred_check
      _
    $region7: #{tpu_custom_call.1} parent=1 // pred_check_branch
      %19 = sbr.rel (0) target = $region9
    $region8: #{tpu_custom_call.1} parent=1 // pred_region
      %20 = dma.done [#allocation3], 128
    $region9: #{tpu_custom_call.1} parent=1 // pred_fallthru
      _
    %v21 = vld [vmem:[#allocation2] sm:$0xff]
    %22 = vrot.lane.b32.xlu0 %v21, 1
    %v23 = vpop.permute.xlu0 %22
    %24 = vst [vmem:[#allocation5] sm:$0xff] %v23
    // Predicated region
    $region10: #{tpu_custom_call.1} parent=1 // pred_check
      _
    $region11: #{tpu_custom_call.1} parent=1 // pred_check_branch
      %26 = sbr.rel (0) target = $region13
    $region12: #{tpu_custom_call.1} parent=1 // pred_region
      %s28 = ssub.s32 128, 128
      %29 = vsyncadd [#allocation4], %s28
      %s31 = sshll.u32 [#allocation5], 4
      %s32 = int_to_ptr.vmem [resolvable:$true] %s31
      %34 = dma.vmem_to_hbm [thread:$0]  %s32, 128, %s1, [#allocation4]
    $region13: #{tpu_custom_call.1} parent=1 // pred_fallthru
      _
    // Predicated region
    $region14: #{tpu_custom_call.1} parent=1 // pred_check
      _
    $region15: #{tpu_custom_call.1} parent=1 // pred_check_branch
      %36 = sbr.rel (0) target = $region17
    $region16: #{tpu_custom_call.1} parent=1 // pred_region
      %37 = dma.done [#allocation4], 128
    $region17: #{tpu_custom_call.1} parent=1 // pred_fallthru
      _
    %38 = vsyncpa [#allocation3], 1
    %39 = vsyncpa [#allocation4], 1

</llo_original>
